<compile_context>
chip_gen: v7x
topology: tpu7x:2x2x1
jax: 0.10.0
libtpu: 0.0.40
codegen_flags: <defaults>
</compile_context>

<pallas_src>
import jax
import jax.numpy as jnp
from jax.experimental import pallas as pl
from jax.experimental.pallas import tpu as pltpu


# ----------------------------------------------------------------------------
# Kernel: 2x2 max-pool, stride 2, on a stacked-row view.
#
#   x_ref : (2*tr, 2*wo)  input rows (row pairs are adjacent sublanes,
#                          column pairs are adjacent lanes)
#   o_ref : (  tr,   wo)  pooled output rows
#   t_ref : (2*wo,   tr)  VMEM scratch holding the row-reduced block transposed
#
# Row pairs are reduced with sublane-strided ref loads (pl.ds stride=2).
# Column pairs sit in adjacent lanes, so we move them onto the sublane axis
# with a cheap 2-D XLU transpose (free slack in a DMA-bound kernel) and apply
# the same strided-load trick on the scratch, then transpose back.
# ----------------------------------------------------------------------------
def _maxpool2x2_kernel(x_ref, o_ref, t_ref):
    tr, wo = o_ref.shape                        # static block dims

    top = x_ref[pl.ds(0, tr, 2), :]             # even input rows   (tr, 2*wo)
    bot = x_ref[pl.ds(1, tr, 2), :]             # odd  input rows   (tr, 2*wo)
    rowmax = jnp.maximum(top, bot)              # (tr, 2*wo)

    t_ref[...] = rowmax.T                       # (2*wo, tr): pairs now on sublanes
    ev = t_ref[pl.ds(0, wo, 2), :]              # even columns      (wo, tr)
    od = t_ref[pl.ds(1, wo, 2), :]              # odd  columns      (wo, tr)
    o_ref[...] = jnp.maximum(ev, od).T          # (tr, wo)


def _plan_row_tile(rows_out, wo, itemsize):
    """Output rows per grid step.

    Per-step VMEM ~= itemsize * tr * wo * 12 (input block double-buffered = 8x,
    output block double-buffered = 2x, transposed scratch = 2x).  Keep it under
    ~8 MiB so the default scoped VMEM limit fits on v5e (16 MiB) as well as
    v6e/v7x (32 MiB), and keep >= 2 grid steps so both v7x TensorCores get work.
    """
    cap = max(8, (8 * 1024 * 1024) // (12 * max(1, itemsize) * max(1, wo)))
    cands = [d for d in range(8, rows_out + 1, 8)
             if rows_out % d == 0 and d <= cap]
    if not cands:
        return rows_out                          # tiny / awkward shape: one block
    tr = max(cands)
    if rows_out // tr < 2:
        two_step = [d for d in cands if rows_out // d >= 2]
        if two_step:
            tr = max(two_step)
    return tr


def maxpool2x2(x):
    """nn.MaxPool2d(2, stride=2) on an NCHW tensor."""
    n, c, h, w = x.shape
    assert h >= 2 and w >= 2, "MaxPool2d(2,2) needs spatial dims >= 2"
    ho, wo = h // 2, w // 2
    if (h, w) != (2 * ho, 2 * wo):
        # PyTorch floor behaviour: a trailing odd row / column is ignored.
        x = x[:, :, : 2 * ho, : 2 * wo]

    rows_in = n * c * 2 * ho
    rows_out = n * c * ho
    xf = x.reshape(rows_in, 2 * wo)              # free, contiguous reshape

    tr = _plan_row_tile(rows_out, wo, x.dtype.itemsize)
    grid = (rows_out // tr,)

    itemsize = x.dtype.itemsize
    out = pl.pallas_call(
        _maxpool2x2_kernel,
        out_shape=jax.ShapeDtypeStruct((rows_out, wo), x.dtype),
        grid=grid,
        in_specs=[pl.BlockSpec((2 * tr, 2 * wo), lambda i: (i, 0))],
        out_specs=pl.BlockSpec((tr, wo), lambda i: (i, 0)),
        scratch_shapes=[pltpu.VMEM((2 * wo, tr), x.dtype)],
        compiler_params=pltpu.CompilerParams(
            dimension_semantics=("parallel",),
        ),
        cost_estimate=pl.CostEstimate(
            flops=3 * rows_out * wo,
            transcendentals=0,
            bytes_accessed=(rows_in * 2 * wo + rows_out * wo) * itemsize,
        ),
    )(xf)

    return out.reshape(n, c, ho, wo)


# ----------------------------------------------------------------------------
# poolLayer.forward
# ----------------------------------------------------------------------------
def pool_layer_forward(x_nchw):
    return maxpool2x2(x_nchw)


if __name__ == "__main__":
    key = jax.random.PRNGKey(0)
    x = jax.random.normal(key, (2, 4, 16, 16), jnp.float32)

    y = pool_layer_forward(x)
    y = jax.block_until_ready(y)

    assert y.shape == (2, 4, 8, 8), y.shape
    # Reference: window max via reshape (exact match expected for max).
    ref = jnp.max(x.reshape(2, 4, 8, 2, 8, 2), axis=(3, 5))
    assert bool(jnp.array_equal(y, ref))
    assert bool(jnp.all(jnp.isfinite(y)))
    print("KERNEL_OK")
</pallas_src>

<mosaic_0001>
module attributes {stable_mosaic.version = 11 : i64} {
  func.func @_maxpool2x2_kernel(%arg0: i32, %arg1: memref<64x16xf32, #tpu.memory_space<vmem>>, %arg2: memref<32x8xf32, #tpu.memory_space<vmem>>, %arg3: memref<16x32xf32, #tpu.memory_space<vmem>>) attributes {dimension_semantics = [#tpu.dimension_semantics<parallel>], iteration_bounds = array<i64: 2>, scalar_prefetch = 0 : i64, scratch_operands = 1 : i64, tpu.core_type = #tpu.core_type<tc>, window_params = [{transform_indices = @transform_0, window_bounds = array<i64: 64, 16>}, {transform_indices = @transform_1, window_bounds = array<i64: 32, 8>}]} {
    %c0 = arith.constant 0 : index
    %c0_0 = arith.constant 0 : index
    %0 = tpu.strided_load %arg1[%c0, %c0_0] {strides = array<i32: 2, 1>} : memref<64x16xf32, #tpu.memory_space<vmem>>, vector<32x16xf32>
    %c1 = arith.constant 1 : index
    %c0_1 = arith.constant 0 : index
    %1 = tpu.strided_load %arg1[%c1, %c0_1] {strides = array<i32: 2, 1>} : memref<64x16xf32, #tpu.memory_space<vmem>>, vector<32x16xf32>
    %2 = arith.maximumf %0, %1 : vector<32x16xf32>
    %3 = tpu.transpose %2, [1, 0] : vector<32x16xf32> -> vector<16x32xf32>
    %c0_2 = arith.constant 0 : index
    %c0_3 = arith.constant 0 : index
    %4 = vector.load %arg3[%c0_2, %c0_3] : memref<16x32xf32, #tpu.memory_space<vmem>>, vector<16x32xf32>
    tpu.vector_store %arg3[%c0_2, %c0_3], %3 {strides = array<i32>} : memref<16x32xf32, #tpu.memory_space<vmem>>, vector<16x32xf32>,
    %c0_4 = arith.constant 0 : index
    %c0_5 = arith.constant 0 : index
    %5 = tpu.strided_load %arg3[%c0_4, %c0_5] {strides = array<i32: 2, 1>} : memref<16x32xf32, #tpu.memory_space<vmem>>, vector<8x32xf32>
    %c1_6 = arith.constant 1 : index
    %c0_7 = arith.constant 0 : index
    %6 = tpu.strided_load %arg3[%c1_6, %c0_7] {strides = array<i32: 2, 1>} : memref<16x32xf32, #tpu.memory_space<vmem>>, vector<8x32xf32>
    %7 = arith.maximumf %5, %6 : vector<8x32xf32>
    %8 = tpu.transpose %7, [1, 0] : vector<8x32xf32> -> vector<32x8xf32>
    %c0_8 = arith.constant 0 : index
    %c0_9 = arith.constant 0 : index
    %9 = vector.load %arg2[%c0_8, %c0_9] : memref<32x8xf32, #tpu.memory_space<vmem>>, vector<32x8xf32>
    tpu.vector_store %arg2[%c0_8, %c0_9], %8 {strides = array<i32>} : memref<32x8xf32, #tpu.memory_space<vmem>>, vector<32x8xf32>,
    return
  }
  func.func @transform_0(%arg0: i32) -> (i32, i32) {
    %c0_i32 = arith.constant 0 : i32
    %c0_i32_0 = arith.constant 0 : i32
    return %arg0, %c0_i32 : i32, i32
  }
  func.func @transform_1(%arg0: i32) -> (i32, i32) {
    %c0_i32 = arith.constant 0 : i32
    %c0_i32_0 = arith.constant 0 : i32
    return %arg0, %c0_i32 : i32, i32
  }
}

</mosaic_0001>

<llo_original>
// kernel: tpu_custom_call.1
$region0: #{tpu_custom_call.1}
  #allocation0 [shape = 'u32[]', space=smem, size = 0x4, offset = 0x4, fixed_abs, tag = 'smem constant byte address 0x4 - core index']
  #allocation1 [shape = 'u32[144,128]{1,0:T(1,128)}', space=vmem, size = 0x12000, scoped, tag = 'internal scratch']
  #allocation2 [shape = 'f32[16,32]{1,0:T(8,128)}', space=vmem, size = 0x2000, scoped, tag = 'scratch operand']
  %s0 = inlined_call_operand.vmem [shape: f32[128,16], index: 0, kind: input, shape index: {}]
  %s1 = inlined_call_operand.vmem [shape: f32[64,8], index: 1, kind: output, shape index: {}]
  %s2 = sld [smem:[#allocation0]]
  $region37: #{tpu_custom_call.1} parent=0
    _
  %s4 = ssub.s32 1, %s2
  %s5 = scalar_select 0, %s4, %s2
  loop: start=0, step=1, limit=4
  $region2: #{tpu_custom_call.1} parent=0 // loop_pre_header
    _
  $region3: #{tpu_custom_call.1} parent=0 // loop_header
    %s7 = sphi 0, %s11
    %p8 = scmp.ge.s32.totalorder %s7, 4
    %s17 = sphi 0, %s19
    %s20 = sphi 0, %s17
    %s21 = sphi 0, %s20
    %s37 = sphi 0, %s21
    %s43 = sphi 0, %s45
    %s46 = sphi 0, %s43
    %s47 = sphi 0, %s46
    %s63 = sphi 0, %s47
  $region4: #{tpu_custom_call.1} parent=0 // loop_header_branch
    %10 = sbr.rel (%p8) target = $region8
  $region5: #{tpu_custom_call.1} parent=0 // loop_body
    %s12 = ssub.s32 %s7, 1
    %s13 = ssub.s32 %s7, 2
    %s14 = sadd.s32 %s7, 1
    %s15 = ssub.s32 %s7, %s14
    %p16 = scmp.eq.s32.totalorder %s15, 0
    %s18 = sadd.s32 %s17, 1
    %s19 = scalar_select %p16, %s17, %s18
    %p22 = pneg %p16
    %p23 = scmp.eq.s32.totalorder %s7, 1
    %p24 = por %p22, %p23
    %p25 = scmp.ne.s32.totalorder %s17, %s20
    %p26 = scmp.eq.s32.totalorder %s7, 0
    %p27 = por %p25, %p26
    %p28 = scmp.ne.s32.totalorder %s17, %s20
    %p29 = scmp.eq.s32.totalorder %s12, 1
    %p30 = por %p28, %p29
    %p31 = scmp.ne.s32.totalorder %s20, %s21
    %p32 = scmp.eq.s32.totalorder %s12, 0
    %p33 = por %p31, %p32
    %p34 = scmp.ne.s32.totalorder %s20, %s21
    %p35 = scmp.eq.s32.totalorder %s13, 1
    %p36 = por %p34, %p35
    %p38 = scmp.ne.s32.totalorder %s21, %s37
    %p39 = scmp.eq.s32.totalorder %s13, 0
    %p40 = por %p38, %p39
    %s41 = ssub.s32 %s7, %s14
    %p42 = scmp.eq.s32.totalorder %s41, 0
    %s44 = sadd.s32 %s43, 1
    %s45 = scalar_select %p42, %s43, %s44
    %p48 = pneg %p42
    %p49 = scmp.eq.s32.totalorder %s7, 1
    %p50 = por %p48, %p49
    %p51 = scmp.ne.s32.totalorder %s43, %s46
    %p52 = scmp.eq.s32.totalorder %s7, 0
    %p53 = por %p51, %p52
    %p54 = scmp.ne.s32.totalorder %s43, %s46
    %p55 = scmp.eq.s32.totalorder %s12, 1
    %p56 = por %p54, %p55
    %p57 = scmp.ne.s32.totalorder %s46, %s47
    %p58 = scmp.eq.s32.totalorder %s12, 0
    %p59 = por %p57, %p58
    %p60 = scmp.ne.s32.totalorder %s46, %s47
    %p61 = scmp.eq.s32.totalorder %s13, 1
    %p62 = por %p60, %p61
    %p64 = scmp.ne.s32.totalorder %s47, %s63
    %p65 = scmp.eq.s32.totalorder %s13, 0
    %p66 = por %p64, %p65
    %p67 = scmp.le.s32.totalorder 1, %s7
    %p68 = scmp.lt.s32.totalorder %s7, 3
    %p69 = pnand %p67, %p68
    %p70 = pneg %p69
    // Predicated region
    $region9: #{tpu_custom_call.1} parent=5 // pred_check
      _
    $region10: #{tpu_custom_call.1} parent=5 // pred_check_branch
      %72 = sbr.rel (%p69) target = $region12
    $region11: #{tpu_custom_call.1} parent=5 // pred_region
      %s73 = ssub.s32 %s7, 1
    $region12: #{tpu_custom_call.1} parent=5 // pred_fallthru
      _
    %p74 = scmp.lt.s32.totalorder %s7, 2
    // Predicated region
    $region13: #{tpu_custom_call.1} parent=5 // pred_check
      %p75 = pneg %p74
    $region14: #{tpu_custom_call.1} parent=5 // pred_check_branch
      %77 = sbr.rel (%p75) target = $region16
    $region15: #{tpu_custom_call.1} parent=5 // pred_region
      // Predicated region
      $region17: #{tpu_custom_call.1} parent=15 // pred_check
        %p78 = pneg %p27
      $region18: #{tpu_custom_call.1} parent=15 // pred_check_branch
        %80 = sbr.rel (%p78) target = $region20
      $region19: #{tpu_custom_call.1} parent=15 // pred_region
        %s81 = smul.u32 8, %s7
        %p82 = scmp.lt.s32.totalorder %s81, 15
        %s83 = scalar_select %p82, %s81, 15
        %s84 = smul.addr %s83, 8
        %s85 = scalar_lea.vmem %s0, %s84
        %s86 = smul.u32 8, %s7
      $region20: #{tpu_custom_call.1} parent=15 // pred_fallthru
        _
    $region16: #{tpu_custom_call.1} parent=5 // pred_fallthru
      _
    %p87 = scmp.le.s32.totalorder 1, %s7
    %p88 = scmp.lt.s32.totalorder %s7, 3
    %p89 = pnand %p87, %p88
    %p90 = pneg %p89
    // Predicated region
    $region21: #{tpu_custom_call.1} parent=5 // pred_check
      _
    $region22: #{tpu_custom_call.1} parent=5 // pred_check_branch
      %92 = sbr.rel (%p89) target = $region24
    $region23: #{tpu_custom_call.1} parent=5 // pred_region
      %s93 = ssub.s32 %s7, 1
      %s94 = smul.u32 8, %s12
      %p95 = scmp.lt.s32.totalorder %s94, 15
      %s96 = scalar_select %p95, %s94, 15
      %s97 = smul.addr %s96, 8
      %s98 = scalar_lea.vmem %s0, %s97
      %p99 = pneg %p33
      %p100 = pneg %p30
      %p101 = pneg %p59
      %p102 = pneg %p56
      %s103 = smul.u32 4, %s12
      %p104 = scmp.lt.s32.totalorder %s103, 7
      %s105 = scalar_select %p104, %s103, 7
      %s106 = smul.addr %s105, 8
      %s107 = scalar_lea.vmem %s1, %s106
      %s108 = smul.u32 8, %s12
      %p109 = scmp.lt.s32.totalorder %s108, 15
      %s110 = scalar_select %p109, %s108, 15
      %s111 = smul.addr %s110, 8
      %s112 = scalar_lea.vmem %s0, %s111
      %s113 = smul.u32 8, %s12
      %s114 = smul.u32 4, %s12
      %p115 = scmp.lt.s32.totalorder %s114, 7
      %s116 = scalar_select %p115, %s114, 7
      %s117 = smul.addr %s116, 8
      %s118 = scalar_lea.vmem %s1, %s117
      %s119 = smul.u32 4, %s12
      %v120 = vld [vmem:[%s112] ss:$2 sm:$0xff]
      %s121 = scalar_lea.vmem %s112, 16
      %v122 = vld [vmem:[%s121] ss:$2 sm:$0xff]
      %s123 = scalar_lea.vmem %s112, 32
      %v124 = vld [vmem:[%s123] ss:$2 sm:$0xff]
      %s125 = scalar_lea.vmem %s112, 48
      %v126 = vld [vmem:[%s125] ss:$2 sm:$0xff]
      %s127 = scalar_lea.vmem %s112, 1
      %v128 = vld [vmem:[%s127] ss:$2 sm:$0xff]
      %s129 = scalar_lea.vmem %s112, 17
      %v130 = vld [vmem:[%s129] ss:$2 sm:$0xff]
      %s131 = scalar_lea.vmem %s112, 33
      %v132 = vld [vmem:[%s131] ss:$2 sm:$0xff]
      %s133 = scalar_lea.vmem %s112, 49
      %v134 = vld [vmem:[%s133] ss:$2 sm:$0xff]
      %v135 = vmax.f32 %v120, %v128
      %v136 = vmax.f32 %v122, %v130
      %v137 = vmax.f32 %v124, %v132
      %v138 = vmax.f32 %v126, %v134
      %139 = vxpose.xlu0.b32.start [1/16] %v135, 128
      %140 = vxpose.xlu0.b32.cont [2/16] %v136, 128
      %141 = vxpose.xlu0.b32.cont [3/16] %v137, 128
      %142 = vxpose.xlu0.b32.cont [4/16] %v138, 128
      %143 = vxpose.xlu0.b32.cont [5/16] 0.0, 128
      %144 = vxpose.xlu0.b32.cont [6/16] 0.0, 128
      %145 = vxpose.xlu0.b32.cont [7/16] 0.0, 128
      %146 = vxpose.xlu0.b32.cont [8/16] 0.0, 128
      %147 = vxpose.xlu0.b32.cont [9/16] 0.0, 128
      %148 = vxpose.xlu0.b32.cont [10/16] 0.0, 128
      %149 = vxpose.xlu0.b32.cont [11/16] 0.0, 128
      %150 = vxpose.xlu0.b32.cont [12/16] 0.0, 128
      %151 = vxpose.xlu0.b32.cont [13/16] 0.0, 128
      %152 = vxpose.xlu0.b32.cont [14/16] 0.0, 128
      %153 = vxpose.xlu0.b32.cont [15/16] 0.0, 128
      %154 = vxpose.xlu0.b32.end [16/16] 0.0, 128
      %v155 = vpop.trf.xlu0
      %v156 = vpop.trf.xlu0
      %v157 = vpop.trf.xlu0
      %v158 = vpop.trf.xlu0
      %v159 = vpop.trf.xlu0
      %v160 = vpop.trf.xlu0
      %v161 = vpop.trf.xlu0
      %v162 = vpop.trf.xlu0
      %v163 = vpop.trf.xlu0
      %v164 = vpop.trf.xlu0
      %v165 = vpop.trf.xlu0
      %v166 = vpop.trf.xlu0
      %v167 = vpop.trf.xlu0
      %v168 = vpop.trf.xlu0
      %v169 = vpop.trf.xlu0
      %v170 = vpop.trf.xlu0
      %vm171 = vcmask 261120
      %172 = vst.msk [vmem:[#allocation2] sm:$0xff] %vm171, %v155
      %173 = vst.msk [vmem:[#allocation2 + $0x8] sm:$0xff] %vm171, %v156
      %v174 = vld [vmem:[#allocation2] ss:$2 sm:$0xff]
      %s175 = scalar_lea.vmem [#allocation2], 1
      %v176 = vld [vmem:[%s175] ss:$2 sm:$0xff]
      %v177 = vmax.f32 %v174, %v176
      %178 = vxpose.xlu0.b32.start [1/16] %v177, 128
      %179 = vxpose.xlu0.b32.cont [2/16] 0.0, 128
      %180 = vxpose.xlu0.b32.cont [3/16] 0.0, 128
      %181 = vxpose.xlu0.b32.cont [4/16] 0.0, 128
      %182 = vxpose.xlu0.b32.cont [5/16] 0.0, 128
      %183 = vxpose.xlu0.b32.cont [6/16] 0.0, 128
      %184 = vxpose.xlu0.b32.cont [7/16] 0.0, 128
      %185 = vxpose.xlu0.b32.cont [8/16] 0.0, 128
      %186 = vxpose.xlu0.b32.cont [9/16] 0.0, 128
      %187 = vxpose.xlu0.b32.cont [10/16] 0.0, 128
      %188 = vxpose.xlu0.b32.cont [11/16] 0.0, 128
      %189 = vxpose.xlu0.b32.cont [12/16] 0.0, 128
      %190 = vxpose.xlu0.b32.cont [13/16] 0.0, 128
      %191 = vxpose.xlu0.b32.cont [14/16] 0.0, 128
      %192 = vxpose.xlu0.b32.cont [15/16] 0.0, 128
      %193 = vxpose.xlu0.b32.end [16/16] 0.0, 128
      %v194 = vpop.trf.xlu0
      %v195 = vpop.trf.xlu0
      %v196 = vpop.trf.xlu0
      %v197 = vpop.trf.xlu0
      %v198 = vpop.trf.xlu0
      %v199 = vpop.trf.xlu0
      %v200 = vpop.trf.xlu0
      %v201 = vpop.trf.xlu0
      %v202 = vpop.trf.xlu0
      %v203 = vpop.trf.xlu0
      %v204 = vpop.trf.xlu0
      %v205 = vpop.trf.xlu0
      %v206 = vpop.trf.xlu0
      %v207 = vpop.trf.xlu0
      %v208 = vpop.trf.xlu0
      %v209 = vpop.trf.xlu0
      %vm210 = vcmask 64512
      %211 = vst.msk [vmem:[%s118] sm:$0xff] %vm210, %v194
      %212 = vst.msk [vmem:[%s118 + $0x8] sm:$0xff] %vm210, %v195
      %213 = vst.msk [vmem:[%s118 + $0x10] sm:$0xff] %vm210, %v196
      %214 = vst.msk [vmem:[%s118 + $0x18] sm:$0xff] %vm210, %v197
      %s215 = smul.u32 4, %s12
      %p216 = scmp.lt.s32.totalorder %s215, 7
      %s217 = scalar_select %p216, %s215, 7
      %s218 = smul.addr %s217, 8
      %s219 = scalar_lea.vmem %s1, %s218
      // Predicated region
      $region25: #{tpu_custom_call.1} parent=23 // pred_check
        %p220 = pneg %p56
      $region26: #{tpu_custom_call.1} parent=23 // pred_check_branch
        %222 = sbr.rel (%p220) target = $region28
      $region27: #{tpu_custom_call.1} parent=23 // pred_region
        %s223 = smul.u32 4, %s12
      $region28: #{tpu_custom_call.1} parent=23 // pred_fallthru
        _
    $region24: #{tpu_custom_call.1} parent=5 // pred_fallthru
      _
    %p224 = scmp.le.s32.totalorder 2, %s7
    // Predicated region
    $region29: #{tpu_custom_call.1} parent=5 // pred_check
      %p225 = pneg %p224
    $region30: #{tpu_custom_call.1} parent=5 // pred_check_branch
      %227 = sbr.rel (%p225) target = $region32
    $region31: #{tpu_custom_call.1} parent=5 // pred_region
      %s228 = ssub.s32 %s7, 2
      // Predicated region
      $region33: #{tpu_custom_call.1} parent=31 // pred_check
        %p229 = pneg %p62
      $region34: #{tpu_custom_call.1} parent=31 // pred_check_branch
        %231 = sbr.rel (%p229) target = $region36
      $region35: #{tpu_custom_call.1} parent=31 // pred_region
        %s232 = smul.u32 4, %s13
        %p233 = scmp.lt.s32.totalorder %s232, 7
        %s234 = scalar_select %p233, %s232, 7
        %s235 = smul.addr %s234, 8
        %s236 = scalar_lea.vmem %s1, %s235
      $region36: #{tpu_custom_call.1} parent=31 // pred_fallthru
        _
    $region32: #{tpu_custom_call.1} parent=5 // pred_fallthru
      _
  $region6: #{tpu_custom_call.1} parent=0 // loop_footer
    %s11 = sadd.s32 1, %s7
  $region7: #{tpu_custom_call.1} parent=0 // loop_footer_branch
    %6 = sbr.rel target = $region3
  $region8: #{tpu_custom_call.1} parent=0 // loop_exit
    _

</llo_original>
